<compile_context>
chip_gen: v5e
topology: v5e:2x2
jax: 0.10.0
libtpu: 0.0.40
codegen_flags: <defaults>
</compile_context>

<pallas_src>
import functools

import jax
import jax.numpy as jnp
from jax import lax
from jax.experimental import pallas as pl
from jax.experimental.pallas import tpu as pltpu


def _loss_kernel(yhat_ref, y_ref, se_out_ref, dq_out_ref, acc_se, acc_dq,
                 *, q, hw, tile, needs_mask):
    n = pl.program_id(0)
    t = pl.program_id(1)
    is_first = jnp.logical_and(n == 0, t == 0)
    is_last = jnp.logical_and(
        n == pl.num_programs(0) - 1, t == pl.num_programs(1) - 1
    )

    @pl.when(is_first)
    def _():
        acc_se[...] = jnp.zeros_like(acc_se)
        acc_dq[...] = jnp.zeros_like(acc_dq)

    yh = yhat_ref[...].astype(jnp.float32)   # (C, T)
    yy = y_ref[...].astype(jnp.float32)      # (C, T)

    if needs_mask:
        # Mask lanes past the true spatial extent (zeros contribute 0 to both
        # partial sums; true counts are used for the means in the wrapper).
        lane = lax.broadcasted_iota(jnp.int32, (1, tile), 1)
        valid = (t * tile + lane) < hw                       # (1, T)
        yh = jnp.where(valid, yh, 0.0)
        yy = jnp.where(valid, yy, 0.0)

    # ---- squared-error partial: full-vreg VPU accumulate, no per-step reduce
    diff = yh - yy
    acc_se[...] += diff * diff                               # (C, T)

    # ---- quantile norm-distance partial ----
    s_y = jnp.sum(yy * yy, axis=0, keepdims=True)            # (1, T)  (XLU)
    s_yh = jnp.sum(yh * yh, axis=0, keepdims=True)           # (1, T)  (XLU)
    dis = jnp.sqrt(s_y) - jnp.sqrt(s_yh)                     # EUP
    scale = jnp.where(dis >= 0.0, q * q, (1.0 - q) * (1.0 - q))
    acc_dq[...] += dis * dis * scale                         # (1, T)

    # ---- single final reduce + scalar store ----
    @pl.when(is_last)
    def _():
        se_out_ref[0, 0] = jnp.sum(acc_se[...])
        dq_out_ref[0, 0] = jnp.sum(acc_dq[...])


def rmse_q_norm_loss(yhat, y, q, *, spatial_tile=8192):
    """yhat, y: NCHW float arrays. Returns scalar loss (float32)."""
    N, C, H, W = yhat.shape
    HW = H * W

    # Native-layout view: (N, C, H*W). Contiguous reshape, no HBM copy.
    yh3 = yhat.reshape(N, C, HW)
    y3 = y.reshape(N, C, HW)

    # Cap the lane tile so double-buffered input blocks stay well under the
    # default VMEM scoped limit (~4 MiB per input block).
    max_lanes_by_vmem = max(128, (4 * 1024 * 1024) // (C * 4))
    tile_cap = min(spatial_tile, max_lanes_by_vmem)

    if HW <= tile_cap:
        T = HW                                   # full extent: no 128 constraint
        num_t = 1
        needs_mask = False
    else:
        T = max(128, (tile_cap // 128) * 128)    # lane tile, multiple of 128
        num_t = pl.cdiv(HW, T)
        needs_mask = (HW % T) != 0               # ragged tail -> in-kernel mask

    grid = (N, num_t)
    kernel = functools.partial(
        _loss_kernel, q=float(q), hw=HW, tile=T, needs_mask=needs_mask
    )

    # Batch dim squeezed out of the kernel view -> kernel refs are (C, T).
    in_spec = pl.BlockSpec((None, C, T), lambda n, t: (n, 0, t))
    scalar_out_spec = pl.BlockSpec(
        (1, 1), lambda n, t: (0, 0), memory_space=pltpu.MemorySpace.SMEM
    )

    sq_err, disq = pl.pallas_call(
        kernel,
        out_shape=(
            jax.ShapeDtypeStruct((1, 1), jnp.float32),
            jax.ShapeDtypeStruct((1, 1), jnp.float32),
        ),
        grid_spec=pltpu.PrefetchScalarGridSpec(
            num_scalar_prefetch=0,
            grid=grid,
            in_specs=[in_spec, in_spec],
            out_specs=(scalar_out_spec, scalar_out_spec),
            scratch_shapes=[
                pltpu.VMEM((C, T), jnp.float32),   # squared-error accumulator
                pltpu.VMEM((1, T), jnp.float32),   # dis_q^2 accumulator
            ],
        ),
        compiler_params=pltpu.CompilerParams(
            # Both grid axes accumulate into shared scratch / the same output
            # block, so they must stay "arbitrary" (a "parallel" axis would race).
            dimension_semantics=("arbitrary", "arbitrary"),
        ),
    )(yh3, y3)

    # Means use the true (unpadded) element / position counts.
    mse = sq_err[0, 0] / jnp.float32(N * C * HW)
    disq_mse = disq[0, 0] / jnp.float32(N * HW)
    return mse + disq_mse


def _reference(yhat, y, q):
    yhat_norm = jnp.sqrt(jnp.sum(yhat**2, axis=1, keepdims=True))
    y_norm = jnp.sqrt(jnp.sum(y**2, axis=1, keepdims=True))
    dis = y_norm - yhat_norm
    dis_q = jnp.maximum((q - 1.0) * dis, q * dis)
    return jnp.mean((yhat - y) ** 2) + jnp.mean(dis_q**2)


if __name__ == "__main__":
    q = 0.7  # quantile parameter of the module (no learned weights)

    key = jax.random.PRNGKey(0)
    k1, k2 = jax.random.split(key)

    # Primary case: single spatial tile per image.
    N, C, H, W = 2, 4, 16, 16
    yhat = jax.random.normal(k1, (N, C, H, W), dtype=jnp.float32)
    y = jax.random.normal(k2, (N, C, H, W), dtype=jnp.float32)

    loss = jax.block_until_ready(rmse_q_norm_loss(yhat, y, q))
    ref = jax.block_until_ready(_reference(yhat, y, q))
    assert jnp.allclose(loss, ref, rtol=1e-5, atol=1e-5), (loss, ref)

    # Secondary case: multi-tile grid + ragged-tail lane-mask path.
    H2, W2 = 10, 16  # HW=160, tile=128 -> grid (2, 2), last tile masked
    yhat2 = jax.random.normal(k1, (N, C, H2, W2), dtype=jnp.float32)
    y2 = jax.random.normal(k2, (N, C, H2, W2), dtype=jnp.float32)
    loss2 = jax.block_until_ready(rmse_q_norm_loss(yhat2, y2, q, spatial_tile=128))
    ref2 = jax.block_until_ready(_reference(yhat2, y2, q))
    assert jnp.allclose(loss2, ref2, rtol=1e-5, atol=1e-5), (loss2, ref2)

    print("KERNEL_OK")
</pallas_src>

<mosaic_0001>
module attributes {stable_mosaic.version = 11 : i64} {
  func.func @_loss_kernel(%arg0: i32, %arg1: i32, %arg2: memref<1x4x256xf32, #tpu.memory_space<vmem>>, %arg3: memref<1x4x256xf32, #tpu.memory_space<vmem>>, %arg4: memref<1x1xf32, #tpu.memory_space<smem>>, %arg5: memref<1x1xf32, #tpu.memory_space<smem>>, %arg6: memref<4x256xf32, #tpu.memory_space<vmem>>, %arg7: memref<1x256xf32, #tpu.memory_space<vmem>>) attributes {dimension_semantics = [#tpu.dimension_semantics<arbitrary>, #tpu.dimension_semantics<arbitrary>], iteration_bounds = array<i64: 2, 1>, scalar_prefetch = 0 : i64, scratch_operands = 2 : i64, tpu.core_type = #tpu.core_type<tc>, window_params = [{transform_indices = @transform_0, window_bounds = array<i64: 1, 4, 256>}, {transform_indices = @transform_1, window_bounds = array<i64: 1, 4, 256>}, {transform_indices = @transform_2, window_bounds = array<i64: 1, 1>}, {transform_indices = @transform_3, window_bounds = array<i64: 1, 1>}]} {
    %c0_i32 = arith.constant 0 : i32
    %0 = arith.cmpi eq, %arg0, %c0_i32 : i32
    %c0_i32_0 = arith.constant 0 : i32
    %1 = arith.cmpi eq, %arg1, %c0_i32_0 : i32
    %2 = arith.andi %0, %1 : i1
    %c1_i32 = arith.constant 1 : i32
    %3 = arith.cmpi eq, %arg0, %c1_i32 : i32
    %c0_i32_1 = arith.constant 0 : i32
    %4 = arith.cmpi eq, %arg1, %c0_i32_1 : i32
    %5 = arith.andi %3, %4 : i1
    %6 = arith.extui %2 : i1 to i32
    %c0_i32_2 = arith.constant 0 : i32
    %7 = arith.cmpi ne, %6, %c0_i32_2 : i32
    scf.if %7 {
      %cst_21 = arith.constant 0.000000e+00 : f32
      %38 = vector.broadcast %cst_21 : f32 to vector<4x256xf32>
      %c0_22 = arith.constant 0 : index
      %c0_23 = arith.constant 0 : index
      %39 = vector.load %arg6[%c0_22, %c0_23] : memref<4x256xf32, #tpu.memory_space<vmem>>, vector<4x256xf32>
      tpu.vector_store %arg6[%c0_22, %c0_23], %38 {strides = array<i32>} : memref<4x256xf32, #tpu.memory_space<vmem>>, vector<4x256xf32>,
      %cst_24 = arith.constant 0.000000e+00 : f32
      %40 = vector.broadcast %cst_24 : f32 to vector<1x256xf32>
      %c0_25 = arith.constant 0 : index
      %c0_26 = arith.constant 0 : index
      %41 = vector.load %arg7[%c0_25, %c0_26] : memref<1x256xf32, #tpu.memory_space<vmem>>, vector<1x256xf32>
      tpu.vector_store %arg7[%c0_25, %c0_26], %40 {strides = array<i32>} : memref<1x256xf32, #tpu.memory_space<vmem>>, vector<1x256xf32>,
    } else {
    }
    %c0 = arith.constant 0 : index
    %c0_3 = arith.constant 0 : index
    %c0_4 = arith.constant 0 : index
    %8 = vector.load %arg2[%c0, %c0_3, %c0_4] : memref<1x4x256xf32, #tpu.memory_space<vmem>>, vector<1x4x256xf32>
    %9 = vector.shape_cast %8 : vector<1x4x256xf32> to vector<4x256xf32>
    %c0_5 = arith.constant 0 : index
    %c0_6 = arith.constant 0 : index
    %c0_7 = arith.constant 0 : index
    %10 = vector.load %arg3[%c0_5, %c0_6, %c0_7] : memref<1x4x256xf32, #tpu.memory_space<vmem>>, vector<1x4x256xf32>
    %11 = vector.shape_cast %10 : vector<1x4x256xf32> to vector<4x256xf32>
    %12 = arith.subf %9, %11 : vector<4x256xf32>
    %c0_8 = arith.constant 0 : index
    %c0_9 = arith.constant 0 : index
    %13 = vector.load %arg6[%c0_8, %c0_9] : memref<4x256xf32, #tpu.memory_space<vmem>>, vector<4x256xf32>
    %14 = arith.mulf %12, %12 : vector<4x256xf32>
    %15 = arith.addf %13, %14 : vector<4x256xf32>
    %c0_10 = arith.constant 0 : index
    %c0_11 = arith.constant 0 : index
    %16 = vector.load %arg6[%c0_10, %c0_11] : memref<4x256xf32, #tpu.memory_space<vmem>>, vector<4x256xf32>
    tpu.vector_store %arg6[%c0_10, %c0_11], %15 {strides = array<i32>} : memref<4x256xf32, #tpu.memory_space<vmem>>, vector<4x256xf32>,
    %17 = arith.mulf %11, %11 : vector<4x256xf32>
    %cst = arith.constant dense<0.000000e+00> : vector<256xf32>
    %18 = vector.multi_reduction <add>, %17, %cst [0] : vector<4x256xf32> to vector<256xf32>
    %19 = vector.shape_cast %18 : vector<256xf32> to vector<1x256xf32>
    %20 = arith.mulf %9, %9 : vector<4x256xf32>
    %cst_12 = arith.constant dense<0.000000e+00> : vector<256xf32>
    %21 = vector.multi_reduction <add>, %20, %cst_12 [0] : vector<4x256xf32> to vector<256xf32>
    %22 = vector.shape_cast %21 : vector<256xf32> to vector<1x256xf32>
    %23 = math.sqrt %19 : vector<1x256xf32>
    %24 = math.sqrt %22 : vector<1x256xf32>
    %25 = arith.subf %23, %24 : vector<1x256xf32>
    %cst_13 = arith.constant 0.000000e+00 : f32
    %26 = vector.broadcast %cst_13 : f32 to vector<1x256xf32>
    %27 = arith.cmpf oge, %25, %26 : vector<1x256xf32>
    %cst_14 = arith.constant 4.900000e-01 : f32
    %cst_15 = arith.constant 9.000000e-02 : f32
    %28 = vector.broadcast %cst_14 : f32 to vector<1x256xf32>
    %29 = vector.broadcast %cst_15 : f32 to vector<1x256xf32>
    %30 = arith.select %27, %28, %29 : vector<1x256xi1>, vector<1x256xf32>
    %c0_16 = arith.constant 0 : index
    %c0_17 = arith.constant 0 : index
    %31 = vector.load %arg7[%c0_16, %c0_17] : memref<1x256xf32, #tpu.memory_space<vmem>>, vector<1x256xf32>
    %32 = arith.mulf %25, %25 : vector<1x256xf32>
    %33 = arith.mulf %32, %30 : vector<1x256xf32>
    %34 = arith.addf %31, %33 : vector<1x256xf32>
    %c0_18 = arith.constant 0 : index
    %c0_19 = arith.constant 0 : index
    %35 = vector.load %arg7[%c0_18, %c0_19] : memref<1x256xf32, #tpu.memory_space<vmem>>, vector<1x256xf32>
    tpu.vector_store %arg7[%c0_18, %c0_19], %34 {strides = array<i32>} : memref<1x256xf32, #tpu.memory_space<vmem>>, vector<1x256xf32>,
    %36 = arith.extui %5 : i1 to i32
    %c0_i32_20 = arith.constant 0 : i32
    %37 = arith.cmpi ne, %36, %c0_i32_20 : i32
    scf.if %37 {
      %c0_21 = arith.constant 0 : index
      %c0_22 = arith.constant 0 : index
      %38 = vector.load %arg6[%c0_21, %c0_22] : memref<4x256xf32, #tpu.memory_space<vmem>>, vector<4x256xf32>
      %39 = vector.shape_cast %38 : vector<4x256xf32> to vector<1x4x256xf32>
      %cst_23 = arith.constant dense<0.000000e+00> : vector<1xf32>
      %40 = vector.multi_reduction <add>, %39, %cst_23 [1, 2] : vector<1x4x256xf32> to vector<1xf32>
      %41 = vector.shape_cast %40 : vector<1xf32> to vector<1x1x1xf32>
      %42 = vector.extract %41[0, 0, 0] : f32 from vector<1x1x1xf32>
      %c0_24 = arith.constant 0 : index
      %c0_25 = arith.constant 0 : index
      %43 = memref.load %arg4[%c0_24, %c0_25] : memref<1x1xf32, #tpu.memory_space<smem>>
      memref.store %42, %arg4[%c0_24, %c0_25] : memref<1x1xf32, #tpu.memory_space<smem>>
      %c0_26 = arith.constant 0 : index
      %c0_27 = arith.constant 0 : index
      %44 = vector.load %arg7[%c0_26, %c0_27] : memref<1x256xf32, #tpu.memory_space<vmem>>, vector<1x256xf32>
      %45 = vector.shape_cast %44 : vector<1x256xf32> to vector<1x1x256xf32>
      %cst_28 = arith.constant dense<0.000000e+00> : vector<1xf32>
      %46 = vector.multi_reduction <add>, %45, %cst_28 [1, 2] : vector<1x1x256xf32> to vector<1xf32>
      %47 = vector.shape_cast %46 : vector<1xf32> to vector<1x1x1xf32>
      %48 = vector.extract %47[0, 0, 0] : f32 from vector<1x1x1xf32>
      %c0_29 = arith.constant 0 : index
      %c0_30 = arith.constant 0 : index
      %49 = memref.load %arg5[%c0_29, %c0_30] : memref<1x1xf32, #tpu.memory_space<smem>>
      memref.store %48, %arg5[%c0_29, %c0_30] : memref<1x1xf32, #tpu.memory_space<smem>>
    } else {
    }
    return
  }
  func.func @transform_0(%arg0: i32, %arg1: i32) -> (i32, i32, i32) {
    %c0_i32 = arith.constant 0 : i32
    %c0_i32_0 = arith.constant 0 : i32
    return %arg0, %c0_i32, %arg1 : i32, i32, i32
  }
  func.func @transform_1(%arg0: i32, %arg1: i32) -> (i32, i32, i32) {
    %c0_i32 = arith.constant 0 : i32
    %c0_i32_0 = arith.constant 0 : i32
    return %arg0, %c0_i32, %arg1 : i32, i32, i32
  }
  func.func @transform_2(%arg0: i32, %arg1: i32) -> (i32, i32) {
    %c0_i32 = arith.constant 0 : i32
    %c0_i32_0 = arith.constant 0 : i32
    %c0_i32_1 = arith.constant 0 : i32
    return %c0_i32, %c0_i32_0 : i32, i32
  }
  func.func @transform_3(%arg0: i32, %arg1: i32) -> (i32, i32) {
    %c0_i32 = arith.constant 0 : i32
    %c0_i32_0 = arith.constant 0 : i32
    %c0_i32_1 = arith.constant 0 : i32
    return %c0_i32, %c0_i32_0 : i32, i32
  }
}

</mosaic_0001>

<llo_original>
// kernel: tpu_custom_call.1
$region0: #{tpu_custom_call.1}
  #allocation0 [shape = 'u32[]', space=smem, size = 0x4, offset = 0x4, fixed_abs, tag = 'smem constant byte address 0x4 - core index']
  #allocation1 [shape = 'u32[72,128]{1,0:T(1,128)}', space=vmem, size = 0x9000, scoped, tag = 'internal scratch']
  #allocation2 [shape = 'f32[4,256]{1,0:T(4,128)}', space=vmem, size = 0x1000, scoped, tag = 'scratch operand']
  #allocation3 [shape = 'f32[1,256]{1,0:T(1,128)}', space=vmem, size = 0x400, scoped, tag = 'scratch operand']
  %s0 = inlined_call_operand.hbm [shape: f32[2,4,256], index: 0, kind: input, shape index: {}]
  %s1 = inlined_call_operand.hbm [shape: f32[2,4,256], index: 1, kind: input, shape index: {}]
  %s2 = inlined_call_operand.hbm [shape: f32[1,1], index: 2, kind: output, shape index: {0}]
  %s3 = inlined_call_operand.hbm [shape: f32[1,1], index: 3, kind: output, shape index: {1}]
  %4 = xla_tuple %s2, %s3
  %s5 = sld [smem:[#allocation0]]
  $region65: #{tpu_custom_call.1} parent=0
    _
  %s7 = ssub.s32 1, %s5
  %s8 = scalar_select 0, %s7, %s5
  $region1: #{tpu_custom_call.1} parent=0
    #allocation4 [shape = 'u8[8192]{0}', space=vmem, size = 0x2000, scoped, tag = 'input window, operand 0']
    #allocation5 [shape = 's32[2]{0}', space=sflag, size = 0x8, scoped, tag = 'scoped memory for tpu_custom_call.1']
    #allocation6 [shape = 's32[2]{0}', space=sflag, size = 0x8, scoped, tag = 'scoped memory for tpu_custom_call.1']
    #allocation7 [shape = 'u8[8192]{0}', space=vmem, size = 0x2000, scoped, tag = 'input window, operand 1']
    #allocation8 [shape = 's32[2]{0}', space=sflag, size = 0x8, scoped, tag = 'scoped memory for tpu_custom_call.1']
    #allocation9 [shape = 'u8[512]{0}', space=smem, size = 0x200, scoped, tag = 'output window, operand 0, single buffered']
    #allocation10 [shape = 'u8[512]{0}', space=smem, size = 0x200, scoped, tag = 'output window, operand 1, single buffered']
    #allocation11 [shape = 's32[1]{0}', space=sflag, size = 0x4, scoped, tag = 'scoped memory for tpu_custom_call.1']
    %9 = vsyncpa [#allocation5], 0
    %s10 = scalar_lea.sflag [#allocation5], 1
    %11 = vsyncpa %s10, 0
    %12 = vsyncpa [#allocation8], 0
    %s13 = scalar_lea.sflag [#allocation8], 1
    %14 = vsyncpa %s13, 0
    %15 = vsyncpa [#allocation6], 0
    %16 = vsyncpa [#allocation11], 0
    loop: start=0, step=1, limit=4
    $region2: #{tpu_custom_call.1} parent=1 // loop_pre_header
      _
    $region3: #{tpu_custom_call.1} parent=1 // loop_header
      %s18 = sphi 0, %s22
      %p19 = scmp.ge.s32.totalorder %s18, 4
      %s25 = sphi 0, %s37
      %s26 = sphi 0, %s33
      %s27 = sphi 0, %s25
      %s28 = sphi 0, %s26
      %s29 = sphi 0, %s27
      %s30 = sphi 0, %s28
      %s42 = sphi 0, %s44
      %s45 = sphi 0, %s42
      %s46 = sphi 0, %s45
      %s62 = sphi 0, %s46
      %s70 = sphi 0, %s72
      %s73 = sphi 0, %s70
      %s74 = sphi 0, %s73
      %s90 = sphi 0, %s74
      %s94 = sphi 0, %s94
      %s96 = sphi 0, %s94
      %s97 = sphi 0, %s96
      %s111 = sphi 0, %s97
      %s115 = sphi 0, %s115
      %s117 = sphi 0, %s115
      %s118 = sphi 0, %s117
      %s132 = sphi 0, %s118
    $region4: #{tpu_custom_call.1} parent=1 // loop_header_branch
      %21 = sbr.rel (%p19) target = $region8
    $region5: #{tpu_custom_call.1} parent=1 // loop_body
      %s23 = ssub.s32 %s18, 1
      %s24 = ssub.s32 %s18, 2
      %s31 = sadd.s32 1, %s26
      %p32 = scmp.ge.s32.totalorder %s31, 1
      %s33 = scalar_select %p32, 0, %s31
      %s34 = sadd.s32 1, %s25
      %s35 = scalar_select %p32, %s34, %s25
      %p36 = scmp.ge.s32.totalorder %s35, 2
      %s37 = scalar_select %p36, 0, %s35
      %s38 = ssub.s32 %s25, %s37
      %s39 = ssub.s32 %s26, %s33
      %s40 = sor.u32 %s38, %s39
      %p41 = scmp.eq.s32.totalorder %s40, 0
      %s43 = sadd.s32 %s42, 1
      %s44 = scalar_select %p41, %s42, %s43
      %p47 = pneg %p41
      %p48 = scmp.eq.s32.totalorder %s18, 1
      %p49 = por %p47, %p48
      %p50 = scmp.ne.s32.totalorder %s42, %s45
      %p51 = scmp.eq.s32.totalorder %s18, 0
      %p52 = por %p50, %p51
      %p53 = scmp.ne.s32.totalorder %s42, %s45
      %p54 = scmp.eq.s32.totalorder %s23, 1
      %p55 = por %p53, %p54
      %p56 = scmp.ne.s32.totalorder %s45, %s46
      %p57 = scmp.eq.s32.totalorder %s23, 0
      %p58 = por %p56, %p57
      %p59 = scmp.ne.s32.totalorder %s45, %s46
      %p60 = scmp.eq.s32.totalorder %s24, 1
      %p61 = por %p59, %p60
      %p63 = scmp.ne.s32.totalorder %s46, %s62
      %p64 = scmp.eq.s32.totalorder %s24, 0
      %p65 = por %p63, %p64
      %s66 = ssub.s32 %s25, %s37
      %s67 = ssub.s32 %s26, %s33
      %s68 = sor.u32 %s66, %s67
      %p69 = scmp.eq.s32.totalorder %s68, 0
      %s71 = sadd.s32 %s70, 1
      %s72 = scalar_select %p69, %s70, %s71
      %p75 = pneg %p69
      %p76 = scmp.eq.s32.totalorder %s18, 1
      %p77 = por %p75, %p76
      %p78 = scmp.ne.s32.totalorder %s70, %s73
      %p79 = scmp.eq.s32.totalorder %s18, 0
      %p80 = por %p78, %p79
      %p81 = scmp.ne.s32.totalorder %s70, %s73
      %p82 = scmp.eq.s32.totalorder %s23, 1
      %p83 = por %p81, %p82
      %p84 = scmp.ne.s32.totalorder %s73, %s74
      %p85 = scmp.eq.s32.totalorder %s23, 0
      %p86 = por %p84, %p85
      %p87 = scmp.ne.s32.totalorder %s73, %s74
      %p88 = scmp.eq.s32.totalorder %s24, 1
      %p89 = por %p87, %p88
      %p91 = scmp.ne.s32.totalorder %s74, %s90
      %p92 = scmp.eq.s32.totalorder %s24, 0
      %p93 = por %p91, %p92
      %s95 = sadd.s32 %s94, 1
      %p98 = scmp.eq.s32.totalorder %s18, 1
      %p99 = scmp.ne.s32.totalorder %s94, %s96
      %p100 = scmp.eq.s32.totalorder %s18, 0
      %p101 = por %p99, %p100
      %p102 = scmp.ne.s32.totalorder %s94, %s96
      %p103 = scmp.eq.s32.totalorder %s23, 1
      %p104 = por %p102, %p103
      %p105 = scmp.ne.s32.totalorder %s96, %s97
      %p106 = scmp.eq.s32.totalorder %s23, 0
      %p107 = por %p105, %p106
      %p108 = scmp.ne.s32.totalorder %s96, %s97
      %p109 = scmp.eq.s32.totalorder %s24, 1
      %p110 = por %p108, %p109
      %p112 = scmp.ne.s32.totalorder %s97, %s111
      %p113 = scmp.eq.s32.totalorder %s24, 0
      %p114 = por %p112, %p113
      %s116 = sadd.s32 %s115, 1
      %p119 = scmp.eq.s32.totalorder %s18, 1
      %p120 = scmp.ne.s32.totalorder %s115, %s117
      %p121 = scmp.eq.s32.totalorder %s18, 0
      %p122 = por %p120, %p121
      %p123 = scmp.ne.s32.totalorder %s115, %s117
      %p124 = scmp.eq.s32.totalorder %s23, 1
      %p125 = por %p123, %p124
      %p126 = scmp.ne.s32.totalorder %s117, %s118
      %p127 = scmp.eq.s32.totalorder %s23, 0
      %p128 = por %p126, %p127
      %p129 = scmp.ne.s32.totalorder %s117, %s118
      %p130 = scmp.eq.s32.totalorder %s24, 1
      %p131 = por %p129, %p130
      %p133 = scmp.ne.s32.totalorder %s118, %s132
      %p134 = scmp.eq.s32.totalorder %s24, 0
      %p135 = por %p133, %p134
      %p136 = scmp.le.s32.totalorder 1, %s18
      %p137 = scmp.lt.s32.totalorder %s18, 3
      %p138 = pnand %p136, %p137
      %p139 = pneg %p138
      // Predicated region
      $region9: #{tpu_custom_call.1} parent=5 // pred_check
        _
      $region10: #{tpu_custom_call.1} parent=5 // pred_check_branch
        %141 = sbr.rel (%p138) target = $region12
      $region11: #{tpu_custom_call.1} parent=5 // pred_region
        %s142 = ssub.s32 %s18, 1
      $region12: #{tpu_custom_call.1} parent=5 // pred_fallthru
        _
      %p143 = scmp.lt.s32.totalorder %s18, 2
      // Predicated region
      $region13: #{tpu_custom_call.1} parent=5 // pred_check
        %p144 = pneg %p143
      $region14: #{tpu_custom_call.1} parent=5 // pred_check_branch
        %146 = sbr.rel (%p144) target = $region16
      $region15: #{tpu_custom_call.1} parent=5 // pred_region
        // Predicated region
        $region17: #{tpu_custom_call.1} parent=15 // pred_check
          %p147 = pneg %p52
        $region18: #{tpu_custom_call.1} parent=15 // pred_check_branch
          %149 = sbr.rel (%p147) target = $region20
        $region19: #{tpu_custom_call.1} parent=15 // pred_region
          %s150 = sand.u32 %s42, 1
          %s151 = scalar_lea.sflag [#allocation5], %s150
          %s152 = sand.u32 %s42, 1
          %s153 = smul.addr %s152, 8
          %s154 = scalar_lea.vmem [#allocation4], %s153
          %s155 = smul.u32 2, %s26
          %157 = vsyncadd %s151, 0
          %s158 = smul.addr %s25, 2
          %s159 = sadd.s32 %s155, %s158
          %s160 = smul.addr %s159, 4
          %s161 = scalar_lea.hbm %s0, %s160
          %s163 = sshll.u32 %s161, 4
          %s164 = int_to_ptr.hbm [resolvable:$true] %s163
          %s165 = sshll.u32 %s154, 4
          %s166 = int_to_ptr.vmem [resolvable:$true] %s165
          %168 = dma.hbm_to_vmem [thread:$0]  %s164, 128, %s166, %s151
        $region20: #{tpu_custom_call.1} parent=15 // pred_fallthru
          _
        // Predicated region
        $region21: #{tpu_custom_call.1} parent=15 // pred_check
          %p169 = pneg %p80
        $region22: #{tpu_custom_call.1} parent=15 // pred_check_branch
          %171 = sbr.rel (%p169) target = $region24
        $region23: #{tpu_custom_call.1} parent=15 // pred_region
          %s172 = sand.u32 %s70, 1
          %s173 = scalar_lea.sflag [#allocation8], %s172
          %s174 = sand.u32 %s70, 1
          %s175 = smul.addr %s174, 8
          %s176 = scalar_lea.vmem [#allocation7], %s175
          %s177 = smul.u32 2, %s26
          %179 = vsyncadd %s173, 0
          %s180 = smul.addr %s25, 2
          %s181 = sadd.s32 %s177, %s180
          %s182 = smul.addr %s181, 4
          %s183 = scalar_lea.hbm %s1, %s182
          %s185 = sshll.u32 %s183, 4
          %s186 = int_to_ptr.hbm [resolvable:$true] %s185
          %s187 = sshll.u32 %s176, 4
          %s188 = int_to_ptr.vmem [resolvable:$true] %s187
          %190 = dma.hbm_to_vmem [thread:$0]  %s186, 128, %s188, %s173
        $region24: #{tpu_custom_call.1} parent=15 // pred_fallthru
          _
      $region16: #{tpu_custom_call.1} parent=5 // pred_fallthru
        _
      %p191 = scmp.le.s32.totalorder 1, %s18
      %p192 = scmp.lt.s32.totalorder %s18, 3
      %p193 = pnand %p191, %p192
      %p194 = pneg %p193
      // Predicated region
      $region25: #{tpu_custom_call.1} parent=5 // pred_check
        _
      $region26: #{tpu_custom_call.1} parent=5 // pred_check_branch
        %196 = sbr.rel (%p193) target = $region28
      $region27: #{tpu_custom_call.1} parent=5 // pred_region
        %s197 = ssub.s32 %s18, 1
        %s198 = sand.u32 %s45, 1
        %s199 = scalar_lea.sflag [#allocation5], %s198
        %s200 = sand.u32 %s45, 1
        %s201 = smul.addr %s200, 8
        %s202 = scalar_lea.vmem [#allocation4], %s201
        // Predicated region
        $region29: #{tpu_custom_call.1} parent=27 // pred_check
          %p203 = pneg %p58
        $region30: #{tpu_custom_call.1} parent=27 // pred_check_branch
          %205 = sbr.rel (%p203) target = $region32
        $region31: #{tpu_custom_call.1} parent=27 // pred_region
          %207 = dma.done %s199, 128
        $region32: #{tpu_custom_call.1} parent=27 // pred_fallthru
          _
        %s208 = sand.u32 %s73, 1
        %s209 = scalar_lea.sflag [#allocation8], %s208
        %s210 = sand.u32 %s73, 1
        %s211 = smul.addr %s210, 8
        %s212 = scalar_lea.vmem [#allocation7], %s211
        // Predicated region
        $region33: #{tpu_custom_call.1} parent=27 // pred_check
          %p213 = pneg %p86
        $region34: #{tpu_custom_call.1} parent=27 // pred_check_branch
          %215 = sbr.rel (%p213) target = $region36
        $region35: #{tpu_custom_call.1} parent=27 // pred_region
          %217 = dma.done %s209, 128
        $region36: #{tpu_custom_call.1} parent=27 // pred_fallthru
          _
        %s218 = sand.u32 %s45, 1
        %s219 = scalar_lea.sflag [#allocation5], %s218
        %s220 = sand.u32 %s45, 1
        %s221 = smul.addr %s220, 8
        %s222 = scalar_lea.vmem [#allocation4], %s221
        %p223 = pneg %p58
        %p224 = pneg %p55
        %s225 = sand.u32 %s73, 1
        %s226 = scalar_lea.sflag [#allocation8], %s225
        %s227 = sand.u32 %s73, 1
        %s228 = smul.addr %s227, 8
        %s229 = scalar_lea.vmem [#allocation7], %s228
        %p230 = pneg %p86
        %p231 = pneg %p83
        %p232 = pneg %p107
        %p233 = pneg %p104
        %p234 = pneg %p128
        %p235 = pneg %p125
        %s236 = smul.u32 2, %s28
        %s237 = smul.u32 2, %s28
        %p238 = scmp.eq.s32.totalorder %s27, 0
        %p239 = scmp.eq.s32.totalorder %s28, 0
        %p240 = pnand %p238, %p239
        %p241 = pneg %p240
        %p242 = scmp.eq.s32.totalorder %s27, 1
        %p243 = pnand %p242, %p239
        %p244 = pneg %p243
        // Predicated region
        $region37: #{tpu_custom_call.1} parent=27 // pred_check
          _
        $region38: #{tpu_custom_call.1} parent=27 // pred_check_branch
          %246 = sbr.rel (%p240) target = $region40
        $region39: #{tpu_custom_call.1} parent=27 // pred_region
          %247 = vst [vmem:[#allocation2] sm:$0xff] 0.0
          %v248 = vlaneseq
          %vm249 = vcmp.ge.s32.totalorder %v248, 0
          %vm250 = vcmp.lt.s32.totalorder %v248, 256
          %vm251 = vmand %vm249, %vm250
          %252 = vst.msk [vmem:[#allocation3] sm:$0x3] %vm251, 0.0
        $region40: #{tpu_custom_call.1} parent=27 // pred_fallthru
          _
        %v253 = vld [vmem:[%s202] sm:$0xff]
        %v254 = vld [vmem:[%s212] sm:$0xff]
        %v255 = vsub.f32 %v253, %v254
        %v256 = vld [vmem:[#allocation2] sm:$0xff]
        %v257 = vmul.f32 %v255, %v255
        %v258 = vadd.f32 %v256, %v257
        %259 = vst [vmem:[#allocation2] sm:$0xff] %v258
        %v260 = vmul.f32 %v254, %v254
        %262 = vst [vmem:[#allocation1] ss:$2 sm:$0xff] %v260
        %v263 = vld.sshfl [vmem:[#allocation1] sm:$0xff pattern:$0x75316420]
        %v264 = vld.sshfl [vmem:[#allocation1 + $0x8] sm:$0xff pattern:$0x75316420]
        %vm267 = vcmask 1043456
        %v268 = vsel %vm267, %v263, 0.0
        %v269 = vrot.slane %v268, 4
        %v270 = vadd.f32 %v268, %v269
        %v271 = vrot.slane %v270, 2
        %v272 = vadd.f32 %v270, %v271
        %v273 = vrot.slane %v272, 1
        %v274 = vadd.f32 %v272, %v273
        %v275 = vsel %vm267, %v264, 0.0
        %v276 = vrot.slane %v275, 4
        %v277 = vadd.f32 %v275, %v276
        %v278 = vrot.slane %v277, 2
        %v279 = vadd.f32 %v277, %v278
        %v280 = vrot.slane %v279, 1
        %v281 = vadd.f32 %v279, %v280
        %v282 = vmul.f32 %v253, %v253
        %284 = vst [vmem:[#allocation1] ss:$2 sm:$0xff] %v282
        %v285 = vld.sshfl [vmem:[#allocation1] sm:$0xff pattern:$0x75316420]
        %v286 = vld.sshfl [vmem:[#allocation1 + $0x8] sm:$0xff pattern:$0x75316420]
        %v289 = vsel %vm267, %v285, 0.0
        %v290 = vrot.slane %v289, 4
        %v291 = vadd.f32 %v289, %v290
        %v292 = vrot.slane %v291, 2
        %v293 = vadd.f32 %v291, %v292
        %v294 = vrot.slane %v293, 1
        %v295 = vadd.f32 %v293, %v294
        %v296 = vsel %vm267, %v286, 0.0
        %v297 = vrot.slane %v296, 4
        %v298 = vadd.f32 %v296, %v297
        %v299 = vrot.slane %v298, 2
        %v300 = vadd.f32 %v298, %v299
        %v301 = vrot.slane %v300, 1
        %v302 = vadd.f32 %v300, %v301
        %v303 = vrsqrt.pop %v274
        %v304 = vmul.f32 %v303, %v274
        %v305 = vmul.f32 %v304, %v303
        %v306 = vmul.f32 0.5, %v305
        %v307 = vsub.f32 1.5, %v306
        %v308 = vmul.f32 %v303, %v307
        %v309 = vmul.f32 %v274, %v308
        %vm310 = vcmp.eq.f32.partialorder %v274, inf
        %v311 = vsel %vm310, %v274, %v309
        %vm312 = vcmp.eq.f32.partialorder %v274, 0.0
        %v313 = vand.u32 %v274, 2147483648
        %v314 = vsel %vm312, %v313, %v311
        %v315 = vrsqrt.pop %v281
        %v316 = vmul.f32 %v315, %v281
        %v317 = vmul.f32 %v316, %v315
        %v318 = vmul.f32 0.5, %v317
        %v319 = vsub.f32 1.5, %v318
        %v320 = vmul.f32 %v315, %v319
        %v321 = vmul.f32 %v281, %v320
        %vm322 = vcmp.eq.f32.partialorder %v281, inf
        %v323 = vsel %vm322, %v281, %v321
        %vm324 = vcmp.eq.f32.partialorder %v281, 0.0
        %v325 = vand.u32 %v281, 2147483648
        %v326 = vsel %vm324, %v325, %v323
        %v327 = vrsqrt.pop %v295
        %v328 = vmul.f32 %v327, %v295
        %v329 = vmul.f32 %v328, %v327
        %v330 = vmul.f32 0.5, %v329
        %v331 = vsub.f32 1.5, %v330
        %v332 = vmul.f32 %v327, %v331
        %v333 = vmul.f32 %v295, %v332
        %vm334 = vcmp.eq.f32.partialorder %v295, inf
        %v335 = vsel %vm334, %v295, %v333
        %vm336 = vcmp.eq.f32.partialorder %v295, 0.0
        %v337 = vand.u32 %v295, 2147483648
        %v338 = vsel %vm336, %v337, %v335
        %v339 = vrsqrt.pop %v302
        %v340 = vmul.f32 %v339, %v302
        %v341 = vmul.f32 %v340, %v339
        %v342 = vmul.f32 0.5, %v341
        %v343 = vsub.f32 1.5, %v342
        %v344 = vmul.f32 %v339, %v343
        %v345 = vmul.f32 %v302, %v344
        %vm346 = vcmp.eq.f32.partialorder %v302, inf
        %v347 = vsel %vm346, %v302, %v345
        %vm348 = vcmp.eq.f32.partialorder %v302, 0.0
        %v349 = vand.u32 %v302, 2147483648
        %v350 = vsel %vm348, %v349, %v347
        %v351 = vsub.f32 %v314, %v338
        %v352 = vsub.f32 %v326, %v350
        %vm353 = vcmp.ge.f32.partialorder %v351, 0.0
        %vm354 = vcmp.ge.f32.partialorder %v352, 0.0
        %v355 = vsel %vm353, 0.49, 0.09
        %v356 = vsel %vm354, 0.49, 0.09
        %v357 = vld [vmem:[#allocation3] sm:$0x3]
        %v358 = vmul.f32 %v351, %v351
        %v359 = vmul.f32 %v352, %v352
        %v360 = vmul.f32 %v358, %v355
        %v361 = vmul.f32 %v359, %v356
        %v364 = vrot.slane %v361, 7
        %vm365 = vcmask 1040384
        %v366 = vsel %vm365, %v360, %v364
        %v368 = vadd.f32 %v357, %v366
        %v369 = vlaneseq
        %vm370 = vcmp.ge.s32.totalorder %v369, 0
        %vm371 = vcmp.lt.s32.totalorder %v369, 256
        %vm372 = vmand %vm370, %vm371
        %373 = vst.msk [vmem:[#allocation3] sm:$0x3] %vm372, %v368
        // Predicated region
        $region41: #{tpu_custom_call.1} parent=27 // pred_check
          _
        $region42: #{tpu_custom_call.1} parent=27 // pred_check_branch
          %375 = sbr.rel (%p243) target = $region44
        $region43: #{tpu_custom_call.1} parent=27 // pred_region
          %v376 = vld [vmem:[#allocation2] sm:$0xff]
          %378 = vst [vmem:[#allocation1] ss:$2 sm:$0xff] %v376
          %v379 = vld.sshfl [vmem:[#allocation1] sm:$0xff pattern:$0x75316420]
          %v380 = vld.sshfl [vmem:[#allocation1 + $0x8] sm:$0xff pattern:$0x75316420]
          %v383 = vsel %vm267, %v379, 0.0
          %v384 = vsel %vm267, %v380, 0.0
          %v385 = vadd.f32 %v383, %v384
          %386 = vadd.xlane.f32.xlu0 %v385
          %v387 = vpop.xlane.xlu0 %386
          %v388 = vrot.slane %v387, 4
          %v389 = vadd.f32 %v387, %v388
          %v390 = vrot.slane %v389, 2
          %v391 = vadd.f32 %v389, %v390
          %v392 = vrot.slane %v391, 1
          %v393 = vadd.f32 %v391, %v392
          %s394 = vtos %v393
          %s395 = scalar_lea.smem [#allocation9], 0
          %396 = sst [smem:[%s395]] %s394
          %v397 = vld [vmem:[#allocation3] sm:$0x3]
          %v399 = vperm.slane %v397, 0
          %v400 = vperm.slane %v397, 1
          %v403 = vsel %vm365, %v399, 0.0
          %v404 = vsel %vm365, %v400, 0.0
          %v405 = vadd.f32 %v403, %v404
          %406 = vadd.xlane.f32.xlu0 %v405
          %v407 = vpop.xlane.xlu0 %406
          %v408 = vrot.slane %v407, 4
          %v409 = vadd.f32 %v407, %v408
          %v410 = vrot.slane %v409, 2
          %v411 = vadd.f32 %v409, %v410
          %v412 = vrot.slane %v411, 1
          %v413 = vadd.f32 %v411, %v412
          %s414 = vtos %v413
          %s415 = scalar_lea.smem [#allocation10], 0
          %416 = sst [smem:[%s415]] %s414
        $region44: #{tpu_custom_call.1} parent=27 // pred_fallthru
          _
        // Predicated region
        $region45: #{tpu_custom_call.1} parent=27 // pred_check
          %p417 = pneg %p104
        $region46: #{tpu_custom_call.1} parent=27 // pred_check_branch
          %419 = sbr.rel (%p417) target = $region48
        $region47: #{tpu_custom_call.1} parent=27 // pred_region
          %421 = vsyncadd [#allocation6], 0
          %s423 = sshll.u32 %s2, 4
          %s424 = int_to_ptr.hbm [resolvable:$true] %s423
          %426 = dma.smem_to_hbm [#allocation9], 16, %s424, [#allocation6]
        $region48: #{tpu_custom_call.1} parent=27 // pred_fallthru
          _
        // Predicated region
        $region49: #{tpu_custom_call.1} parent=27 // pred_check
          %p427 = pneg %p125
        $region50: #{tpu_custom_call.1} parent=27 // pred_check_branch
          %429 = sbr.rel (%p427) target = $region52
        $region51: #{tpu_custom_call.1} parent=27 // pred_region
          %431 = vsyncadd [#allocation11], 0
          %s433 = sshll.u32 %s3, 4
          %s434 = int_to_ptr.hbm [resolvable:$true] %s433
          %436 = dma.smem_to_hbm [#allocation10], 16, %s434, [#allocation11]
        $region52: #{tpu_custom_call.1} parent=27 // pred_fallthru
          _
        // Predicated region
        $region53: #{tpu_custom_call.1} parent=27 // pred_check
          %p437 = pneg %p104
        $region54: #{tpu_custom_call.1} parent=27 // pred_check_branch
          %439 = sbr.rel (%p437) target = $region56
        $region55: #{tpu_custom_call.1} parent=27 // pred_region
          %441 = dma.done [#allocation6], 16
        $region56: #{tpu_custom_call.1} parent=27 // pred_fallthru
          _
        // Predicated region
        $region57: #{tpu_custom_call.1} parent=27 // pred_check
          %p442 = pneg %p125
        $region58: #{tpu_custom_call.1} parent=27 // pred_check_branch
          %444 = sbr.rel (%p442) target = $region60
        $region59: #{tpu_custom_call.1} parent=27 // pred_region
          %446 = dma.done [#allocation11], 16
        $region60: #{tpu_custom_call.1} parent=27 // pred_fallthru
          _
        %447 = sfence
      $region28: #{tpu_custom_call.1} parent=5 // pred_fallthru
        _
      %p448 = scmp.le.s32.totalorder 2, %s18
      // Predicated region
      $region61: #{tpu_custom_call.1} parent=5 // pred_check
        %p449 = pneg %p448
      $region62: #{tpu_custom_call.1} parent=5 // pred_check_branch
        %451 = sbr.rel (%p449) target = $region64
      $region63: #{tpu_custom_call.1} parent=5 // pred_region
        %s452 = ssub.s32 %s18, 2
      $region64: #{tpu_custom_call.1} parent=5 // pred_fallthru
        _
    $region6: #{tpu_custom_call.1} parent=1 // loop_footer
      %s22 = sadd.s32 1, %s18
    $region7: #{tpu_custom_call.1} parent=1 // loop_footer_branch
      %17 = sbr.rel target = $region3
    $region8: #{tpu_custom_call.1} parent=1 // loop_exit
      _
    %453 = vsyncpa [#allocation5], 1
    %s454 = scalar_lea.sflag [#allocation5], 1
    %455 = vsyncpa %s454, 1
    %456 = vsyncpa [#allocation8], 1
    %s457 = scalar_lea.sflag [#allocation8], 1
    %458 = vsyncpa %s457, 1
    %459 = vsyncpa [#allocation6], 1
    %s460 = scalar_lea.sflag [#allocation6], 1
    %461 = vsyncpa %s460, 1
    %462 = vsyncpa [#allocation11], 1

</llo_original>
